<compile_context>
chip_gen: v7x
topology: tpu7x:2x2x1
jax: 0.10.0
libtpu: 0.0.40
codegen_flags: <defaults>
</compile_context>

<pallas_src>
import jax
import jax.numpy as jnp
from jax.experimental import pallas as pl
from jax.experimental.pallas import tpu as pltpu


def _round_up(x, m):
    return ((x + m - 1) // m) * m


def _vmem_limit_bytes():
    """Use most of the chip's physical VMEM (128 MiB v5e/v6e, 64 MiB v7x)."""
    try:
        cap = pltpu.get_tpu_info().vmem_capacity_bytes
    except Exception:
        cap = 64 * 1024 * 1024
    return min(int(cap * 0.85), 112 * 1024 * 1024)


def _choose_tm(M, tm_max=512):
    """Pick an M tile: minimal pad waste, >=2 tiles when possible (v7x 2 TCs)."""
    M8 = _round_up(max(M, 1), 8)
    if M8 <= 256:
        if M8 <= 8:
            return M8
        return _round_up((M8 + 1) // 2, 8)        # split small M across 2 cores
    best_t, best_key = None, None
    for t in (128, 256, 512):
        if t > tm_max:
            continue
        mp = _round_up(M, t)
        if mp // t < 2:                            # keep both TensorCores busy
            continue
        key = (mp - M, -t)                         # min waste, prefer larger tile
        if best_key is None or key < best_key:
            best_key, best_t = key, t
    return best_t if best_t is not None else 128


def _complex_ffn_kernel(xr_ref, xi_ref,
                        w1r_ref, w1i_ref, b1r_ref, b1i_ref,
                        w2r_ref, w2i_ref, b2r_ref, b2i_ref,
                        yr_ref, yi_ref):
    # xr/xi : (TM, E) bf16      w1r/w1i : (E, D) bf16      b1r/b1i : (1, D) f32
    # yr/yi : (TM, E) f32       w2r/w2i : (D, E) bf16      b2r/b2i : (1, E) f32
    xr = xr_ref[...]
    xi = xi_ref[...]
    w1r = w1r_ref[...]
    w1i = w1i_ref[...]

    # ---- ComplexLinear #1 (bf16 MXU operands, f32 accumulation) ----
    hr = (jnp.dot(xr, w1r, preferred_element_type=jnp.float32)
          - jnp.dot(xi, w1i, preferred_element_type=jnp.float32)
          + b1r_ref[...])
    hi = (jnp.dot(xr, w1i, preferred_element_type=jnp.float32)
          + jnp.dot(xi, w1r, preferred_element_type=jnp.float32)
          + b1i_ref[...])

    # ---- CReLU fused with bf16 downcast (ends f32 h live range early) ----
    hr = jnp.maximum(hr, 0.0).astype(jnp.bfloat16)
    hi = jnp.maximum(hi, 0.0).astype(jnp.bfloat16)

    # ---- ComplexLinear #2 ----
    w2r = w2r_ref[...]
    w2i = w2i_ref[...]
    yr = (jnp.dot(hr, w2r, preferred_element_type=jnp.float32)
          - jnp.dot(hi, w2i, preferred_element_type=jnp.float32)
          + b2r_ref[...])
    yi = (jnp.dot(hr, w2i, preferred_element_type=jnp.float32)
          + jnp.dot(hi, w2r, preferred_element_type=jnp.float32)
          + b2i_ref[...])

    # ---- ComplexDropout (inference mode -> identity) ----
    # TODO(synk): training-mode dropout (shared real/imag mask) would need
    # pltpu.prng_seed + pltpu.prng_random_bits; omitted for eval semantics.
    yr_ref[...] = yr.astype(yr_ref.dtype)
    yi_ref[...] = yi.astype(yi_ref.dtype)


def prepare_params(params, n_embed, d_inner):
    """Pad weights/biases to lane multiples and cast weights to bf16 ONCE
    (hoisted out of the per-call forward; reuse the returned dict)."""
    (w1r, w1i, b1r, b1i, w2r, w2i, b2r, b2i) = params
    E = _round_up(n_embed, 128)
    D = _round_up(d_inner, 128)

    def pad2(a, rows, cols):
        return jnp.pad(a, ((0, rows - a.shape[0]), (0, cols - a.shape[1])))

    return dict(
        n_embed=n_embed, d_inner=d_inner, E=E, D=D,
        w1r=pad2(w1r, E, D).astype(jnp.bfloat16),
        w1i=pad2(w1i, E, D).astype(jnp.bfloat16),
        b1r=pad2(b1r, 1, D).astype(jnp.float32),
        b1i=pad2(b1i, 1, D).astype(jnp.float32),
        w2r=pad2(w2r, D, E).astype(jnp.bfloat16),
        w2i=pad2(w2i, D, E).astype(jnp.bfloat16),
        b2r=pad2(b2r, 1, E).astype(jnp.float32),
        b2i=pad2(b2i, 1, E).astype(jnp.float32),
    )


def complex_feedforward(xr, xi, prep):
    """xr, xi: (M, n_embed) float32.  Returns (yr, yi), each (M, n_embed) f32."""
    M, n_embed = xr.shape
    assert n_embed == prep["n_embed"]
    E, D = prep["E"], prep["D"]

    # TM small enough that the f32 h intermediate stays modest at very large D.
    tm_max = 256 if D >= 4096 else 512
    TM = _choose_tm(M, tm_max=tm_max)
    Mp = _round_up(M, TM)

    # Pad + cast activations (single fused XLA pad/convert per half; no concat).
    xr_p = jnp.pad(xr, ((0, Mp - M), (0, E - n_embed))).astype(jnp.bfloat16)
    xi_p = jnp.pad(xi, ((0, Mp - M), (0, E - n_embed))).astype(jnp.bfloat16)

    # TODO(synk): if 4*E*D bf16 weight bytes exceed the VMEM budget (huge
    # n_embed*d_inner on v7x), add a D-reduction grid axis ("arbitrary") with
    # an f32 accumulator scratch instead of keeping weights fully resident.

    act_spec = lambda: pl.BlockSpec((TM, E), lambda i: (i, 0))
    const = pl.Buffered(1)   # weights/biases: constant index map -> 1 buffer

    grid = (Mp // TM,)
    yr_p, yi_p = pl.pallas_call(
        _complex_ffn_kernel,
        out_shape=(jax.ShapeDtypeStruct((Mp, E), jnp.float32),
                   jax.ShapeDtypeStruct((Mp, E), jnp.float32)),
        grid_spec=pltpu.PrefetchScalarGridSpec(
            num_scalar_prefetch=0,
            grid=grid,
            in_specs=[
                act_spec(),                                                     # xr
                act_spec(),                                                     # xi
                pl.BlockSpec((E, D), lambda i: (0, 0), pipeline_mode=const),    # w1r
                pl.BlockSpec((E, D), lambda i: (0, 0), pipeline_mode=const),    # w1i
                pl.BlockSpec((1, D), lambda i: (0, 0), pipeline_mode=const),    # b1r
                pl.BlockSpec((1, D), lambda i: (0, 0), pipeline_mode=const),    # b1i
                pl.BlockSpec((D, E), lambda i: (0, 0), pipeline_mode=const),    # w2r
                pl.BlockSpec((D, E), lambda i: (0, 0), pipeline_mode=const),    # w2i
                pl.BlockSpec((1, E), lambda i: (0, 0), pipeline_mode=const),    # b2r
                pl.BlockSpec((1, E), lambda i: (0, 0), pipeline_mode=const),    # b2i
            ],
            out_specs=[
                pl.BlockSpec((TM, E), lambda i: (i, 0)),                        # yr
                pl.BlockSpec((TM, E), lambda i: (i, 0)),                        # yi
            ],
        ),
        compiler_params=pltpu.CompilerParams(
            dimension_semantics=("parallel",),          # shard M tiles across TCs
            vmem_limit_bytes=_vmem_limit_bytes(),
        ),
    )(xr_p, xi_p,
      prep["w1r"], prep["w1i"], prep["b1r"], prep["b1i"],
      prep["w2r"], prep["w2i"], prep["b2r"], prep["b2i"])

    return yr_p[:M, :n_embed], yi_p[:M, :n_embed]


def init_params(key, n_embed, d_inner):
    """Deterministic init for two ComplexLinear layers (real+imag weight/bias)."""
    ks = jax.random.split(key, 8)
    s1 = 1.0 / jnp.sqrt(n_embed)
    s2 = 1.0 / jnp.sqrt(d_inner)
    w1r = jax.random.uniform(ks[0], (n_embed, d_inner), jnp.float32, -s1, s1)
    w1i = jax.random.uniform(ks[1], (n_embed, d_inner), jnp.float32, -s1, s1)
    b1r = jax.random.uniform(ks[2], (1, d_inner), jnp.float32, -s1, s1)
    b1i = jax.random.uniform(ks[3], (1, d_inner), jnp.float32, -s1, s1)
    w2r = jax.random.uniform(ks[4], (d_inner, n_embed), jnp.float32, -s2, s2)
    w2i = jax.random.uniform(ks[5], (d_inner, n_embed), jnp.float32, -s2, s2)
    b2r = jax.random.uniform(ks[6], (1, n_embed), jnp.float32, -s2, s2)
    b2i = jax.random.uniform(ks[7], (1, n_embed), jnp.float32, -s2, s2)
    return (w1r, w1i, b1r, b1i, w2r, w2i, b2r, b2i)


def _reference(xr, xi, params):
    (w1r, w1i, b1r, b1i, w2r, w2i, b2r, b2i) = params
    hr = xr @ w1r - xi @ w1i + b1r
    hi = xr @ w1i + xi @ w1r + b1i
    hr = jnp.maximum(hr, 0.0)
    hi = jnp.maximum(hi, 0.0)
    yr = hr @ w2r - hi @ w2i + b2r
    yi = hr @ w2i + hi @ w2r + b2i
    return yr, yi


if __name__ == "__main__":
    batch, seq, n_embed, d_inner = 2, 8, 32, 64
    dropout = 0.1  # inference mode -> identity

    key = jax.random.PRNGKey(0)
    kx, kp = jax.random.split(key)
    kxr, kxi = jax.random.split(kx)

    # Complex input of logical shape (batch, seq, n_embed), flattened to (M, n_embed).
    xr = jax.random.normal(kxr, (batch * seq, n_embed), jnp.float32)
    xi = jax.random.normal(kxi, (batch * seq, n_embed), jnp.float32)
    params = init_params(kp, n_embed, d_inner)

    # Weight fusion/padding done once (hoisted out of the per-call forward).
    prep = prepare_params(params, n_embed, d_inner)

    yr, yi = complex_feedforward(xr, xi, prep)
    yr, yi = jax.block_until_ready((yr, yi))

    ref_r, ref_i = _reference(xr, xi, params)
    # bf16 MXU operands with f32 accumulation -> slightly looser tolerance vs f32 ref.
    assert jnp.allclose(yr, ref_r, atol=5e-2, rtol=5e-2)
    assert jnp.allclose(yi, ref_i, atol=5e-2, rtol=5e-2)
    assert yr.shape == (batch * seq, n_embed) and yi.shape == (batch * seq, n_embed)

    print("KERNEL_OK")
</pallas_src>

<mosaic_0001>
module attributes {stable_mosaic.version = 11 : i64} {
  func.func @_complex_ffn_kernel(%arg0: i32, %arg1: memref<8x128xbf16, #tpu.memory_space<vmem>>, %arg2: memref<8x128xbf16, #tpu.memory_space<vmem>>, %arg3: memref<128x128xbf16, #tpu.memory_space<vmem>>, %arg4: memref<128x128xbf16, #tpu.memory_space<vmem>>, %arg5: memref<1x128xf32, #tpu.memory_space<vmem>>, %arg6: memref<1x128xf32, #tpu.memory_space<vmem>>, %arg7: memref<128x128xbf16, #tpu.memory_space<vmem>>, %arg8: memref<128x128xbf16, #tpu.memory_space<vmem>>, %arg9: memref<1x128xf32, #tpu.memory_space<vmem>>, %arg10: memref<1x128xf32, #tpu.memory_space<vmem>>, %arg11: memref<8x128xf32, #tpu.memory_space<vmem>>, %arg12: memref<8x128xf32, #tpu.memory_space<vmem>>) attributes {dimension_semantics = [#tpu.dimension_semantics<parallel>], iteration_bounds = array<i64: 2>, scalar_prefetch = 0 : i64, scratch_operands = 0 : i64, tpu.core_type = #tpu.core_type<tc>, window_params = [{transform_indices = @transform_0, window_bounds = array<i64: 8, 128>}, {transform_indices = @transform_1, window_bounds = array<i64: 8, 128>}, {pipeline_mode = #tpu.pipeline_mode<synchronous>, transform_indices = @transform_2, window_bounds = array<i64: 128, 128>}, {pipeline_mode = #tpu.pipeline_mode<synchronous>, transform_indices = @transform_3, window_bounds = array<i64: 128, 128>}, {pipeline_mode = #tpu.pipeline_mode<synchronous>, transform_indices = @transform_4, window_bounds = array<i64: 1, 128>}, {pipeline_mode = #tpu.pipeline_mode<synchronous>, transform_indices = @transform_5, window_bounds = array<i64: 1, 128>}, {pipeline_mode = #tpu.pipeline_mode<synchronous>, transform_indices = @transform_6, window_bounds = array<i64: 128, 128>}, {pipeline_mode = #tpu.pipeline_mode<synchronous>, transform_indices = @transform_7, window_bounds = array<i64: 128, 128>}, {pipeline_mode = #tpu.pipeline_mode<synchronous>, transform_indices = @transform_8, window_bounds = array<i64: 1, 128>}, {pipeline_mode = #tpu.pipeline_mode<synchronous>, transform_indices = @transform_9, window_bounds = array<i64: 1, 128>}, {transform_indices = @transform_10, window_bounds = array<i64: 8, 128>}, {transform_indices = @transform_11, window_bounds = array<i64: 8, 128>}]} {
    %c0 = arith.constant 0 : index
    %c0_0 = arith.constant 0 : index
    %0 = vector.load %arg1[%c0, %c0_0] : memref<8x128xbf16, #tpu.memory_space<vmem>>, vector<8x128xbf16>
    %c0_1 = arith.constant 0 : index
    %c0_2 = arith.constant 0 : index
    %1 = vector.load %arg2[%c0_1, %c0_2] : memref<8x128xbf16, #tpu.memory_space<vmem>>, vector<8x128xbf16>
    %c0_3 = arith.constant 0 : index
    %c0_4 = arith.constant 0 : index
    %2 = vector.load %arg3[%c0_3, %c0_4] : memref<128x128xbf16, #tpu.memory_space<vmem>>, vector<128x128xbf16>
    %c0_5 = arith.constant 0 : index
    %c0_6 = arith.constant 0 : index
    %3 = vector.load %arg4[%c0_5, %c0_6] : memref<128x128xbf16, #tpu.memory_space<vmem>>, vector<128x128xbf16>
    %cst = arith.constant dense<0.000000e+00> : vector<8x128xf32>
    %4 = tpu.matmul %0, %2, %cst {dimension_numbers = #tpu.dot_dimension_numbers<[1], [0], [0], [1], [0, 0, 1, 1], [], []>} : vector<8x128xbf16>, vector<128x128xbf16>, vector<8x128xf32> -> vector<8x128xf32>
    %cst_7 = arith.constant dense<0.000000e+00> : vector<8x128xf32>
    %5 = tpu.matmul %1, %3, %cst_7 {dimension_numbers = #tpu.dot_dimension_numbers<[1], [0], [0], [1], [0, 0, 1, 1], [], []>} : vector<8x128xbf16>, vector<128x128xbf16>, vector<8x128xf32> -> vector<8x128xf32>
    %6 = arith.subf %4, %5 : vector<8x128xf32>
    %c0_8 = arith.constant 0 : index
    %c0_9 = arith.constant 0 : index
    %7 = vector.load %arg5[%c0_8, %c0_9] : memref<1x128xf32, #tpu.memory_space<vmem>>, vector<1x128xf32>
    %8 = vector.broadcast %7 : vector<1x128xf32> to vector<8x128xf32>
    %9 = arith.addf %6, %8 : vector<8x128xf32>
    %cst_10 = arith.constant dense<0.000000e+00> : vector<8x128xf32>
    %10 = tpu.matmul %0, %3, %cst_10 {dimension_numbers = #tpu.dot_dimension_numbers<[1], [0], [0], [1], [0, 0, 1, 1], [], []>} : vector<8x128xbf16>, vector<128x128xbf16>, vector<8x128xf32> -> vector<8x128xf32>
    %cst_11 = arith.constant dense<0.000000e+00> : vector<8x128xf32>
    %11 = tpu.matmul %1, %2, %cst_11 {dimension_numbers = #tpu.dot_dimension_numbers<[1], [0], [0], [1], [0, 0, 1, 1], [], []>} : vector<8x128xbf16>, vector<128x128xbf16>, vector<8x128xf32> -> vector<8x128xf32>
    %12 = arith.addf %10, %11 : vector<8x128xf32>
    %c0_12 = arith.constant 0 : index
    %c0_13 = arith.constant 0 : index
    %13 = vector.load %arg6[%c0_12, %c0_13] : memref<1x128xf32, #tpu.memory_space<vmem>>, vector<1x128xf32>
    %14 = vector.broadcast %13 : vector<1x128xf32> to vector<8x128xf32>
    %15 = arith.addf %12, %14 : vector<8x128xf32>
    %cst_14 = arith.constant 0.000000e+00 : f32
    %16 = vector.broadcast %cst_14 : f32 to vector<8x128xf32>
    %17 = arith.maximumf %9, %16 : vector<8x128xf32>
    %18 = arith.truncf %17 : vector<8x128xf32> to vector<8x128xbf16>
    %cst_15 = arith.constant 0.000000e+00 : f32
    %19 = vector.broadcast %cst_15 : f32 to vector<8x128xf32>
    %20 = arith.maximumf %15, %19 : vector<8x128xf32>
    %21 = arith.truncf %20 : vector<8x128xf32> to vector<8x128xbf16>
    %c0_16 = arith.constant 0 : index
    %c0_17 = arith.constant 0 : index
    %22 = vector.load %arg7[%c0_16, %c0_17] : memref<128x128xbf16, #tpu.memory_space<vmem>>, vector<128x128xbf16>
    %c0_18 = arith.constant 0 : index
    %c0_19 = arith.constant 0 : index
    %23 = vector.load %arg8[%c0_18, %c0_19] : memref<128x128xbf16, #tpu.memory_space<vmem>>, vector<128x128xbf16>
    %cst_20 = arith.constant dense<0.000000e+00> : vector<8x128xf32>
    %24 = tpu.matmul %18, %22, %cst_20 {dimension_numbers = #tpu.dot_dimension_numbers<[1], [0], [0], [1], [0, 0, 1, 1], [], []>} : vector<8x128xbf16>, vector<128x128xbf16>, vector<8x128xf32> -> vector<8x128xf32>
    %cst_21 = arith.constant dense<0.000000e+00> : vector<8x128xf32>
    %25 = tpu.matmul %21, %23, %cst_21 {dimension_numbers = #tpu.dot_dimension_numbers<[1], [0], [0], [1], [0, 0, 1, 1], [], []>} : vector<8x128xbf16>, vector<128x128xbf16>, vector<8x128xf32> -> vector<8x128xf32>
    %26 = arith.subf %24, %25 : vector<8x128xf32>
    %c0_22 = arith.constant 0 : index
    %c0_23 = arith.constant 0 : index
    %27 = vector.load %arg9[%c0_22, %c0_23] : memref<1x128xf32, #tpu.memory_space<vmem>>, vector<1x128xf32>
    %28 = vector.broadcast %27 : vector<1x128xf32> to vector<8x128xf32>
    %29 = arith.addf %26, %28 : vector<8x128xf32>
    %cst_24 = arith.constant dense<0.000000e+00> : vector<8x128xf32>
    %30 = tpu.matmul %18, %23, %cst_24 {dimension_numbers = #tpu.dot_dimension_numbers<[1], [0], [0], [1], [0, 0, 1, 1], [], []>} : vector<8x128xbf16>, vector<128x128xbf16>, vector<8x128xf32> -> vector<8x128xf32>
    %cst_25 = arith.constant dense<0.000000e+00> : vector<8x128xf32>
    %31 = tpu.matmul %21, %22, %cst_25 {dimension_numbers = #tpu.dot_dimension_numbers<[1], [0], [0], [1], [0, 0, 1, 1], [], []>} : vector<8x128xbf16>, vector<128x128xbf16>, vector<8x128xf32> -> vector<8x128xf32>
    %32 = arith.addf %30, %31 : vector<8x128xf32>
    %c0_26 = arith.constant 0 : index
    %c0_27 = arith.constant 0 : index
    %33 = vector.load %arg10[%c0_26, %c0_27] : memref<1x128xf32, #tpu.memory_space<vmem>>, vector<1x128xf32>
    %34 = vector.broadcast %33 : vector<1x128xf32> to vector<8x128xf32>
    %35 = arith.addf %32, %34 : vector<8x128xf32>
    %c0_28 = arith.constant 0 : index
    %c0_29 = arith.constant 0 : index
    %36 = vector.load %arg11[%c0_28, %c0_29] : memref<8x128xf32, #tpu.memory_space<vmem>>, vector<8x128xf32>
    tpu.vector_store %arg11[%c0_28, %c0_29], %29 {strides = array<i32>} : memref<8x128xf32, #tpu.memory_space<vmem>>, vector<8x128xf32>,
    %c0_30 = arith.constant 0 : index
    %c0_31 = arith.constant 0 : index
    %37 = vector.load %arg12[%c0_30, %c0_31] : memref<8x128xf32, #tpu.memory_space<vmem>>, vector<8x128xf32>
    tpu.vector_store %arg12[%c0_30, %c0_31], %35 {strides = array<i32>} : memref<8x128xf32, #tpu.memory_space<vmem>>, vector<8x128xf32>,
    return
  }
  func.func @transform_0(%arg0: i32) -> (i32, i32) {
    %c0_i32 = arith.constant 0 : i32
    %c0_i32_0 = arith.constant 0 : i32
    return %arg0, %c0_i32 : i32, i32
  }
  func.func @transform_1(%arg0: i32) -> (i32, i32) {
    %c0_i32 = arith.constant 0 : i32
    %c0_i32_0 = arith.constant 0 : i32
    return %arg0, %c0_i32 : i32, i32
  }
  func.func @transform_2(%arg0: i32) -> (i32, i32) {
    %c0_i32 = arith.constant 0 : i32
    %c0_i32_0 = arith.constant 0 : i32
    %c0_i32_1 = arith.constant 0 : i32
    return %c0_i32, %c0_i32_0 : i32, i32
  }
  func.func @transform_3(%arg0: i32) -> (i32, i32) {
    %c0_i32 = arith.constant 0 : i32
    %c0_i32_0 = arith.constant 0 : i32
    %c0_i32_1 = arith.constant 0 : i32
    return %c0_i32, %c0_i32_0 : i32, i32
  }
  func.func @transform_4(%arg0: i32) -> (i32, i32) {
    %c0_i32 = arith.constant 0 : i32
    %c0_i32_0 = arith.constant 0 : i32
    %c0_i32_1 = arith.constant 0 : i32
    return %c0_i32, %c0_i32_0 : i32, i32
  }
  func.func @transform_5(%arg0: i32) -> (i32, i32) {
    %c0_i32 = arith.constant 0 : i32
    %c0_i32_0 = arith.constant 0 : i32
    %c0_i32_1 = arith.constant 0 : i32
    return %c0_i32, %c0_i32_0 : i32, i32
  }
  func.func @transform_6(%arg0: i32) -> (i32, i32) {
    %c0_i32 = arith.constant 0 : i32
    %c0_i32_0 = arith.constant 0 : i32
    %c0_i32_1 = arith.constant 0 : i32
    return %c0_i32, %c0_i32_0 : i32, i32
  }
  func.func @transform_7(%arg0: i32) -> (i32, i32) {
    %c0_i32 = arith.constant 0 : i32
    %c0_i32_0 = arith.constant 0 : i32
    %c0_i32_1 = arith.constant 0 : i32
    return %c0_i32, %c0_i32_0 : i32, i32
  }
  func.func @transform_8(%arg0: i32) -> (i32, i32) {
    %c0_i32 = arith.constant 0 : i32
    %c0_i32_0 = arith.constant 0 : i32
    %c0_i32_1 = arith.constant 0 : i32
    return %c0_i32, %c0_i32_0 : i32, i32
  }
  func.func @transform_9(%arg0: i32) -> (i32, i32) {
    %c0_i32 = arith.constant 0 : i32
    %c0_i32_0 = arith.constant 0 : i32
    %c0_i32_1 = arith.constant 0 : i32
    return %c0_i32, %c0_i32_0 : i32, i32
  }
  func.func @transform_10(%arg0: i32) -> (i32, i32) {
    %c0_i32 = arith.constant 0 : i32
    %c0_i32_0 = arith.constant 0 : i32
    return %arg0, %c0_i32 : i32, i32
  }
  func.func @transform_11(%arg0: i32) -> (i32, i32) {
    %c0_i32 = arith.constant 0 : i32
    %c0_i32_0 = arith.constant 0 : i32
    return %arg0, %c0_i32 : i32, i32
  }
}

</mosaic_0001>

<llo_original>
// kernel: tpu_custom_call.1
$region0: #{tpu_custom_call.1}
  #allocation0 [shape = 'u32[]', space=smem, size = 0x4, offset = 0x4, fixed_abs, tag = 'smem constant byte address 0x4 - core index']
  #allocation1 [shape = 'u32[144,128]{1,0:T(1,128)}', space=vmem, size = 0x12000, scoped, tag = 'internal scratch']
  %s0 = inlined_call_operand.hbm [shape: bf16[16,128], index: 0, kind: input, shape index: {}]
  %s1 = inlined_call_operand.hbm [shape: bf16[16,128], index: 1, kind: input, shape index: {}]
  %s2 = inlined_call_operand.hbm [shape: bf16[128,128], index: 2, kind: input, shape index: {}]
  %s3 = inlined_call_operand.hbm [shape: bf16[128,128], index: 3, kind: input, shape index: {}]
  %s4 = inlined_call_operand.vmem [shape: f32[1,128], index: 4, kind: input, shape index: {}]
  %s5 = inlined_call_operand.vmem [shape: f32[1,128], index: 5, kind: input, shape index: {}]
  %s6 = inlined_call_operand.hbm [shape: bf16[128,128], index: 6, kind: input, shape index: {}]
  %s7 = inlined_call_operand.hbm [shape: bf16[128,128], index: 7, kind: input, shape index: {}]
  %s8 = inlined_call_operand.vmem [shape: f32[1,128], index: 8, kind: input, shape index: {}]
  %s9 = inlined_call_operand.vmem [shape: f32[1,128], index: 9, kind: input, shape index: {}]
  %s10 = inlined_call_operand.hbm [shape: f32[16,128], index: 10, kind: output, shape index: {0}]
  %s11 = inlined_call_operand.hbm [shape: f32[16,128], index: 11, kind: output, shape index: {1}]
  %12 = xla_tuple %s10, %s11
  %s13 = sld [smem:[#allocation0]]
  $region105: #{tpu_custom_call.1} parent=0
    _
  %s15 = ssub.s32 1, %s13
  %s16 = scalar_select 0, %s15, %s13
  $region1: #{tpu_custom_call.1} parent=0
    #allocation2 [shape = 'u8[4096]{0}', space=vmem, size = 0x1000, scoped, tag = 'input window, operand 0']
    #allocation3 [shape = 's32[2]{0}', space=sflag, size = 0x8, scoped, tag = 'scoped memory for tpu_custom_call.1']
    #allocation4 [shape = 's32[2]{0}', space=sflag, size = 0x8, scoped, tag = 'scoped memory for tpu_custom_call.1']
    #allocation5 [shape = 'u8[4096]{0}', space=vmem, size = 0x1000, scoped, tag = 'input window, operand 1']
    #allocation6 [shape = 's32[2]{0}', space=sflag, size = 0x8, scoped, tag = 'scoped memory for tpu_custom_call.1']
    #allocation7 [shape = 'u8[32768]{0}', space=vmem, size = 0x8000, scoped, tag = 'input window, operand 2, single buffered']
    #allocation8 [shape = 'u8[32768]{0}', space=vmem, size = 0x8000, scoped, tag = 'input window, operand 3, single buffered']
    #allocation9 [shape = 's32[1]{0}', space=sflag, size = 0x4, scoped, tag = 'scoped memory for tpu_custom_call.1']
    #allocation10 [shape = 'u8[32768]{0}', space=vmem, size = 0x8000, scoped, tag = 'input window, operand 6, single buffered']
    #allocation11 [shape = 'u8[32768]{0}', space=vmem, size = 0x8000, scoped, tag = 'input window, operand 7, single buffered']
    #allocation12 [shape = 's32[1]{0}', space=sflag, size = 0x4, scoped, tag = 'scoped memory for tpu_custom_call.1']
    #allocation13 [shape = 'u8[8192]{0}', space=vmem, size = 0x2000, scoped, tag = 'output window, operand 0']
    #allocation14 [shape = 'u8[8192]{0}', space=vmem, size = 0x2000, scoped, tag = 'output window, operand 1']
    #allocation15 [shape = 's32[2]{0}', space=sflag, size = 0x8, scoped, tag = 'scoped memory for tpu_custom_call.1']
    %17 = vsyncpa [#allocation3], 0
    %s18 = scalar_lea.sflag [#allocation3], 1
    %19 = vsyncpa %s18, 0
    %20 = vsyncpa [#allocation6], 0
    %s21 = scalar_lea.sflag [#allocation6], 1
    %22 = vsyncpa %s21, 0
    %23 = vsyncpa [#allocation9], 0
    %24 = vsyncpa [#allocation12], 0
    %25 = vsyncpa [#allocation4], 0
    %s26 = scalar_lea.sflag [#allocation4], 1
    %27 = vsyncpa %s26, 0
    %28 = vsyncpa [#allocation15], 0
    %s29 = scalar_lea.sflag [#allocation15], 1
    %30 = vsyncpa %s29, 0
    loop: start=0, step=1, limit=4
    $region2: #{tpu_custom_call.1} parent=1 // loop_pre_header
      _
    $region3: #{tpu_custom_call.1} parent=1 // loop_header
      %s32 = sphi 0, %s36
      %p33 = scmp.ge.s32.totalorder %s32, 4
      %s42 = sphi 0, %s44
      %s45 = sphi 0, %s42
      %s46 = sphi 0, %s45
      %s62 = sphi 0, %s46
      %s68 = sphi 0, %s70
      %s71 = sphi 0, %s68
      %s72 = sphi 0, %s71
      %s88 = sphi 0, %s72
      %s92 = sphi 0, %s92
      %s94 = sphi 0, %s92
      %s95 = sphi 0, %s94
      %s109 = sphi 0, %s95
      %s113 = sphi 0, %s113
      %s115 = sphi 0, %s113
      %s116 = sphi 0, %s115
      %s130 = sphi 0, %s116
      %s134 = sphi 0, %s134
      %s136 = sphi 0, %s134
      %s137 = sphi 0, %s136
      %s151 = sphi 0, %s137
      %s155 = sphi 0, %s155
      %s157 = sphi 0, %s155
      %s158 = sphi 0, %s157
      %s172 = sphi 0, %s158
      %s176 = sphi 0, %s176
      %s178 = sphi 0, %s176
      %s179 = sphi 0, %s178
      %s193 = sphi 0, %s179
      %s197 = sphi 0, %s197
      %s199 = sphi 0, %s197
      %s200 = sphi 0, %s199
      %s214 = sphi 0, %s200
      %s218 = sphi 0, %s218
      %s220 = sphi 0, %s218
      %s221 = sphi 0, %s220
      %s235 = sphi 0, %s221
      %s239 = sphi 0, %s239
      %s241 = sphi 0, %s239
      %s242 = sphi 0, %s241
      %s256 = sphi 0, %s242
      %s262 = sphi 0, %s264
      %s265 = sphi 0, %s262
      %s266 = sphi 0, %s265
      %s282 = sphi 0, %s266
      %s288 = sphi 0, %s290
      %s291 = sphi 0, %s288
      %s292 = sphi 0, %s291
      %s308 = sphi 0, %s292
    $region4: #{tpu_custom_call.1} parent=1 // loop_header_branch
      %35 = sbr.rel (%p33) target = $region8
    $region5: #{tpu_custom_call.1} parent=1 // loop_body
      %s37 = ssub.s32 %s32, 1
      %s38 = ssub.s32 %s32, 2
      %s39 = sadd.s32 %s32, 1
      %s40 = ssub.s32 %s32, %s39
      %p41 = scmp.eq.s32.totalorder %s40, 0
      %s43 = sadd.s32 %s42, 1
      %s44 = scalar_select %p41, %s42, %s43
      %p47 = pneg %p41
      %p48 = scmp.eq.s32.totalorder %s32, 1
      %p49 = por %p47, %p48
      %p50 = scmp.ne.s32.totalorder %s42, %s45
      %p51 = scmp.eq.s32.totalorder %s32, 0
      %p52 = por %p50, %p51
      %p53 = scmp.ne.s32.totalorder %s42, %s45
      %p54 = scmp.eq.s32.totalorder %s37, 1
      %p55 = por %p53, %p54
      %p56 = scmp.ne.s32.totalorder %s45, %s46
      %p57 = scmp.eq.s32.totalorder %s37, 0
      %p58 = por %p56, %p57
      %p59 = scmp.ne.s32.totalorder %s45, %s46
      %p60 = scmp.eq.s32.totalorder %s38, 1
      %p61 = por %p59, %p60
      %p63 = scmp.ne.s32.totalorder %s46, %s62
      %p64 = scmp.eq.s32.totalorder %s38, 0
      %p65 = por %p63, %p64
      %s66 = ssub.s32 %s32, %s39
      %p67 = scmp.eq.s32.totalorder %s66, 0
      %s69 = sadd.s32 %s68, 1
      %s70 = scalar_select %p67, %s68, %s69
      %p73 = pneg %p67
      %p74 = scmp.eq.s32.totalorder %s32, 1
      %p75 = por %p73, %p74
      %p76 = scmp.ne.s32.totalorder %s68, %s71
      %p77 = scmp.eq.s32.totalorder %s32, 0
      %p78 = por %p76, %p77
      %p79 = scmp.ne.s32.totalorder %s68, %s71
      %p80 = scmp.eq.s32.totalorder %s37, 1
      %p81 = por %p79, %p80
      %p82 = scmp.ne.s32.totalorder %s71, %s72
      %p83 = scmp.eq.s32.totalorder %s37, 0
      %p84 = por %p82, %p83
      %p85 = scmp.ne.s32.totalorder %s71, %s72
      %p86 = scmp.eq.s32.totalorder %s38, 1
      %p87 = por %p85, %p86
      %p89 = scmp.ne.s32.totalorder %s72, %s88
      %p90 = scmp.eq.s32.totalorder %s38, 0
      %p91 = por %p89, %p90
      %s93 = sadd.s32 %s92, 1
      %p96 = scmp.eq.s32.totalorder %s32, 1
      %p97 = scmp.ne.s32.totalorder %s92, %s94
      %p98 = scmp.eq.s32.totalorder %s32, 0
      %p99 = por %p97, %p98
      %p100 = scmp.ne.s32.totalorder %s92, %s94
      %p101 = scmp.eq.s32.totalorder %s37, 1
      %p102 = por %p100, %p101
      %p103 = scmp.ne.s32.totalorder %s94, %s95
      %p104 = scmp.eq.s32.totalorder %s37, 0
      %p105 = por %p103, %p104
      %p106 = scmp.ne.s32.totalorder %s94, %s95
      %p107 = scmp.eq.s32.totalorder %s38, 1
      %p108 = por %p106, %p107
      %p110 = scmp.ne.s32.totalorder %s95, %s109
      %p111 = scmp.eq.s32.totalorder %s38, 0
      %p112 = por %p110, %p111
      %s114 = sadd.s32 %s113, 1
      %p117 = scmp.eq.s32.totalorder %s32, 1
      %p118 = scmp.ne.s32.totalorder %s113, %s115
      %p119 = scmp.eq.s32.totalorder %s32, 0
      %p120 = por %p118, %p119
      %p121 = scmp.ne.s32.totalorder %s113, %s115
      %p122 = scmp.eq.s32.totalorder %s37, 1
      %p123 = por %p121, %p122
      %p124 = scmp.ne.s32.totalorder %s115, %s116
      %p125 = scmp.eq.s32.totalorder %s37, 0
      %p126 = por %p124, %p125
      %p127 = scmp.ne.s32.totalorder %s115, %s116
      %p128 = scmp.eq.s32.totalorder %s38, 1
      %p129 = por %p127, %p128
      %p131 = scmp.ne.s32.totalorder %s116, %s130
      %p132 = scmp.eq.s32.totalorder %s38, 0
      %p133 = por %p131, %p132
      %s135 = sadd.s32 %s134, 1
      %p138 = scmp.eq.s32.totalorder %s32, 1
      %p139 = scmp.ne.s32.totalorder %s134, %s136
      %p140 = scmp.eq.s32.totalorder %s32, 0
      %p141 = por %p139, %p140
      %p142 = scmp.ne.s32.totalorder %s134, %s136
      %p143 = scmp.eq.s32.totalorder %s37, 1
      %p144 = por %p142, %p143
      %p145 = scmp.ne.s32.totalorder %s136, %s137
      %p146 = scmp.eq.s32.totalorder %s37, 0
      %p147 = por %p145, %p146
      %p148 = scmp.ne.s32.totalorder %s136, %s137
      %p149 = scmp.eq.s32.totalorder %s38, 1
      %p150 = por %p148, %p149
      %p152 = scmp.ne.s32.totalorder %s137, %s151
      %p153 = scmp.eq.s32.totalorder %s38, 0
      %p154 = por %p152, %p153
      %s156 = sadd.s32 %s155, 1
      %p159 = scmp.eq.s32.totalorder %s32, 1
      %p160 = scmp.ne.s32.totalorder %s155, %s157
      %p161 = scmp.eq.s32.totalorder %s32, 0
      %p162 = por %p160, %p161
      %p163 = scmp.ne.s32.totalorder %s155, %s157
      %p164 = scmp.eq.s32.totalorder %s37, 1
      %p165 = por %p163, %p164
      %p166 = scmp.ne.s32.totalorder %s157, %s158
      %p167 = scmp.eq.s32.totalorder %s37, 0
      %p168 = por %p166, %p167
      %p169 = scmp.ne.s32.totalorder %s157, %s158
      %p170 = scmp.eq.s32.totalorder %s38, 1
      %p171 = por %p169, %p170
      %p173 = scmp.ne.s32.totalorder %s158, %s172
      %p174 = scmp.eq.s32.totalorder %s38, 0
      %p175 = por %p173, %p174
      %s177 = sadd.s32 %s176, 1
      %p180 = scmp.eq.s32.totalorder %s32, 1
      %p181 = scmp.ne.s32.totalorder %s176, %s178
      %p182 = scmp.eq.s32.totalorder %s32, 0
      %p183 = por %p181, %p182
      %p184 = scmp.ne.s32.totalorder %s176, %s178
      %p185 = scmp.eq.s32.totalorder %s37, 1
      %p186 = por %p184, %p185
      %p187 = scmp.ne.s32.totalorder %s178, %s179
      %p188 = scmp.eq.s32.totalorder %s37, 0
      %p189 = por %p187, %p188
      %p190 = scmp.ne.s32.totalorder %s178, %s179
      %p191 = scmp.eq.s32.totalorder %s38, 1
      %p192 = por %p190, %p191
      %p194 = scmp.ne.s32.totalorder %s179, %s193
      %p195 = scmp.eq.s32.totalorder %s38, 0
      %p196 = por %p194, %p195
      %s198 = sadd.s32 %s197, 1
      %p201 = scmp.eq.s32.totalorder %s32, 1
      %p202 = scmp.ne.s32.totalorder %s197, %s199
      %p203 = scmp.eq.s32.totalorder %s32, 0
      %p204 = por %p202, %p203
      %p205 = scmp.ne.s32.totalorder %s197, %s199
      %p206 = scmp.eq.s32.totalorder %s37, 1
      %p207 = por %p205, %p206
      %p208 = scmp.ne.s32.totalorder %s199, %s200
      %p209 = scmp.eq.s32.totalorder %s37, 0
      %p210 = por %p208, %p209
      %p211 = scmp.ne.s32.totalorder %s199, %s200
      %p212 = scmp.eq.s32.totalorder %s38, 1
      %p213 = por %p211, %p212
      %p215 = scmp.ne.s32.totalorder %s200, %s214
      %p216 = scmp.eq.s32.totalorder %s38, 0
      %p217 = por %p215, %p216
      %s219 = sadd.s32 %s218, 1
      %p222 = scmp.eq.s32.totalorder %s32, 1
      %p223 = scmp.ne.s32.totalorder %s218, %s220
      %p224 = scmp.eq.s32.totalorder %s32, 0
      %p225 = por %p223, %p224
      %p226 = scmp.ne.s32.totalorder %s218, %s220
      %p227 = scmp.eq.s32.totalorder %s37, 1
      %p228 = por %p226, %p227
      %p229 = scmp.ne.s32.totalorder %s220, %s221
      %p230 = scmp.eq.s32.totalorder %s37, 0
      %p231 = por %p229, %p230
      %p232 = scmp.ne.s32.totalorder %s220, %s221
      %p233 = scmp.eq.s32.totalorder %s38, 1
      %p234 = por %p232, %p233
      %p236 = scmp.ne.s32.totalorder %s221, %s235
      %p237 = scmp.eq.s32.totalorder %s38, 0
      %p238 = por %p236, %p237
      %s240 = sadd.s32 %s239, 1
      %p243 = scmp.eq.s32.totalorder %s32, 1
      %p244 = scmp.ne.s32.totalorder %s239, %s241
      %p245 = scmp.eq.s32.totalorder %s32, 0
      %p246 = por %p244, %p245
      %p247 = scmp.ne.s32.totalorder %s239, %s241
      %p248 = scmp.eq.s32.totalorder %s37, 1
      %p249 = por %p247, %p248
      %p250 = scmp.ne.s32.totalorder %s241, %s242
      %p251 = scmp.eq.s32.totalorder %s37, 0
      %p252 = por %p250, %p251
      %p253 = scmp.ne.s32.totalorder %s241, %s242
      %p254 = scmp.eq.s32.totalorder %s38, 1
      %p255 = por %p253, %p254
      %p257 = scmp.ne.s32.totalorder %s242, %s256
      %p258 = scmp.eq.s32.totalorder %s38, 0
      %p259 = por %p257, %p258
      %s260 = ssub.s32 %s32, %s39
      %p261 = scmp.eq.s32.totalorder %s260, 0
      %s263 = sadd.s32 %s262, 1
      %s264 = scalar_select %p261, %s262, %s263
      %p267 = pneg %p261
      %p268 = scmp.eq.s32.totalorder %s32, 1
      %p269 = por %p267, %p268
      %p270 = scmp.ne.s32.totalorder %s262, %s265
      %p271 = scmp.eq.s32.totalorder %s32, 0
      %p272 = por %p270, %p271
      %p273 = scmp.ne.s32.totalorder %s262, %s265
      %p274 = scmp.eq.s32.totalorder %s37, 1
      %p275 = por %p273, %p274
      %p276 = scmp.ne.s32.totalorder %s265, %s266
      %p277 = scmp.eq.s32.totalorder %s37, 0
      %p278 = por %p276, %p277
      %p279 = scmp.ne.s32.totalorder %s265, %s266
      %p280 = scmp.eq.s32.totalorder %s38, 1
      %p281 = por %p279, %p280
      %p283 = scmp.ne.s32.totalorder %s266, %s282
      %p284 = scmp.eq.s32.totalorder %s38, 0
      %p285 = por %p283, %p284
      %s286 = ssub.s32 %s32, %s39
      %p287 = scmp.eq.s32.totalorder %s286, 0
      %s289 = sadd.s32 %s288, 1
      %s290 = scalar_select %p287, %s288, %s289
      %p293 = pneg %p287
      %p294 = scmp.eq.s32.totalorder %s32, 1
      %p295 = por %p293, %p294
      %p296 = scmp.ne.s32.totalorder %s288, %s291
      %p297 = scmp.eq.s32.totalorder %s32, 0
      %p298 = por %p296, %p297
      %p299 = scmp.ne.s32.totalorder %s288, %s291
      %p300 = scmp.eq.s32.totalorder %s37, 1
      %p301 = por %p299, %p300
      %p302 = scmp.ne.s32.totalorder %s291, %s292
      %p303 = scmp.eq.s32.totalorder %s37, 0
      %p304 = por %p302, %p303
      %p305 = scmp.ne.s32.totalorder %s291, %s292
      %p306 = scmp.eq.s32.totalorder %s38, 1
      %p307 = por %p305, %p306
      %p309 = scmp.ne.s32.totalorder %s292, %s308
      %p310 = scmp.eq.s32.totalorder %s38, 0
      %p311 = por %p309, %p310
      %p312 = scmp.le.s32.totalorder 1, %s32
      %p313 = scmp.lt.s32.totalorder %s32, 3
      %p314 = pnand %p312, %p313
      %p315 = pneg %p314
      // Predicated region
      $region9: #{tpu_custom_call.1} parent=5 // pred_check
        _
      $region10: #{tpu_custom_call.1} parent=5 // pred_check_branch
        %317 = sbr.rel (%p314) target = $region12
      $region11: #{tpu_custom_call.1} parent=5 // pred_region
        %s318 = ssub.s32 %s32, 1
        // Predicated region
        $region13: #{tpu_custom_call.1} parent=11 // pred_check
          %p319 = pneg %p105
        $region14: #{tpu_custom_call.1} parent=11 // pred_check_branch
          %321 = sbr.rel (%p319) target = $region16
        $region15: #{tpu_custom_call.1} parent=11 // pred_region
          %s323 = ssub.s32 1024, 1024
          %324 = vsyncadd [#allocation6], %s323
          %s325 = sshll.u32 [#allocation7], 4
          %s326 = int_to_ptr.vmem [resolvable:$true] %s325
          %331 = dma.hbm_to_vmem [thread:$0]  %s2, 1024, %s326, [#allocation6], 64, 64, 4
        $region16: #{tpu_custom_call.1} parent=11 // pred_fallthru
          _
        // Predicated region
        $region17: #{tpu_custom_call.1} parent=11 // pred_check
          %p332 = pneg %p126
        $region18: #{tpu_custom_call.1} parent=11 // pred_check_branch
          %334 = sbr.rel (%p332) target = $region20
        $region19: #{tpu_custom_call.1} parent=11 // pred_region
          %s336 = ssub.s32 1024, 1024
          %337 = vsyncadd [#allocation9], %s336
          %s338 = sshll.u32 [#allocation8], 4
          %s339 = int_to_ptr.vmem [resolvable:$true] %s338
          %344 = dma.hbm_to_vmem [thread:$0]  %s3, 1024, %s339, [#allocation9], 64, 64, 4
        $region20: #{tpu_custom_call.1} parent=11 // pred_fallthru
          _
        // Predicated region
        $region21: #{tpu_custom_call.1} parent=11 // pred_check
          %p345 = pneg %p147
        $region22: #{tpu_custom_call.1} parent=11 // pred_check_branch
          %347 = sbr.rel (%p345) target = $region24
        $region23: #{tpu_custom_call.1} parent=11 // pred_region
          _
        $region24: #{tpu_custom_call.1} parent=11 // pred_fallthru
          _
        // Predicated region
        $region25: #{tpu_custom_call.1} parent=11 // pred_check
          %p348 = pneg %p168
        $region26: #{tpu_custom_call.1} parent=11 // pred_check_branch
          %350 = sbr.rel (%p348) target = $region28
        $region27: #{tpu_custom_call.1} parent=11 // pred_region
          _
        $region28: #{tpu_custom_call.1} parent=11 // pred_fallthru
          _
        // Predicated region
        $region29: #{tpu_custom_call.1} parent=11 // pred_check
          %p351 = pneg %p189
        $region30: #{tpu_custom_call.1} parent=11 // pred_check_branch
          %353 = sbr.rel (%p351) target = $region32
        $region31: #{tpu_custom_call.1} parent=11 // pred_region
          %s355 = ssub.s32 1024, 1024
          %356 = vsyncadd [#allocation9], %s355
          %s357 = sshll.u32 [#allocation10], 4
          %s358 = int_to_ptr.vmem [resolvable:$true] %s357
          %363 = dma.hbm_to_vmem [thread:$0]  %s6, 1024, %s358, [#allocation9], 64, 64, 4
        $region32: #{tpu_custom_call.1} parent=11 // pred_fallthru
          _
        // Predicated region
        $region33: #{tpu_custom_call.1} parent=11 // pred_check
          %p364 = pneg %p210
        $region34: #{tpu_custom_call.1} parent=11 // pred_check_branch
          %366 = sbr.rel (%p364) target = $region36
        $region35: #{tpu_custom_call.1} parent=11 // pred_region
          %s368 = ssub.s32 1024, 1024
          %369 = vsyncadd [#allocation12], %s368
          %s370 = sshll.u32 [#allocation11], 4
          %s371 = int_to_ptr.vmem [resolvable:$true] %s370
          %376 = dma.hbm_to_vmem [thread:$0]  %s7, 1024, %s371, [#allocation12], 64, 64, 4
        $region36: #{tpu_custom_call.1} parent=11 // pred_fallthru
          _
        // Predicated region
        $region37: #{tpu_custom_call.1} parent=11 // pred_check
          %p377 = pneg %p231
        $region38: #{tpu_custom_call.1} parent=11 // pred_check_branch
          %379 = sbr.rel (%p377) target = $region40
        $region39: #{tpu_custom_call.1} parent=11 // pred_region
          _
        $region40: #{tpu_custom_call.1} parent=11 // pred_fallthru
          _
        // Predicated region
        $region41: #{tpu_custom_call.1} parent=11 // pred_check
          %p380 = pneg %p252
        $region42: #{tpu_custom_call.1} parent=11 // pred_check_branch
          %382 = sbr.rel (%p380) target = $region44
        $region43: #{tpu_custom_call.1} parent=11 // pred_region
          _
        $region44: #{tpu_custom_call.1} parent=11 // pred_fallthru
          _
      $region12: #{tpu_custom_call.1} parent=5 // pred_fallthru
        _
      %p383 = scmp.lt.s32.totalorder %s32, 2
      // Predicated region
      $region45: #{tpu_custom_call.1} parent=5 // pred_check
        %p384 = pneg %p383
      $region46: #{tpu_custom_call.1} parent=5 // pred_check_branch
        %386 = sbr.rel (%p384) target = $region48
      $region47: #{tpu_custom_call.1} parent=5 // pred_region
        // Predicated region
        $region49: #{tpu_custom_call.1} parent=47 // pred_check
          %p387 = pneg %p52
        $region50: #{tpu_custom_call.1} parent=47 // pred_check_branch
          %389 = sbr.rel (%p387) target = $region52
        $region51: #{tpu_custom_call.1} parent=47 // pred_region
          %s390 = sand.u32 %s42, 1
          %s391 = scalar_lea.sflag [#allocation3], %s390
          %s392 = sand.u32 %s42, 1
          %s393 = smul.addr %s392, 4
          %s394 = scalar_lea.vmem [#allocation2], %s393
          %s396 = ssub.s32 64, 64
          %397 = vsyncadd %s391, %s396
          %s398 = smul.addr %s32, 64
          %s399 = scalar_lea.hbm %s0, %s398
          %s401 = sshll.u32 %s394, 4
          %s402 = int_to_ptr.vmem [resolvable:$true] %s401
          %404 = dma.hbm_to_vmem [thread:$0]  %s399, 64, %s402, %s391
        $region52: #{tpu_custom_call.1} parent=47 // pred_fallthru
          _
        // Predicated region
        $region53: #{tpu_custom_call.1} parent=47 // pred_check
          %p405 = pneg %p78
        $region54: #{tpu_custom_call.1} parent=47 // pred_check_branch
          %407 = sbr.rel (%p405) target = $region56
        $region55: #{tpu_custom_call.1} parent=47 // pred_region
          %s408 = sand.u32 %s32, 1
          %s409 = scalar_lea.sflag [#allocation6], %s408
          %s410 = sand.u32 %s68, 1
          %s411 = smul.addr %s410, 4
          %s412 = scalar_lea.vmem [#allocation5], %s411
          %s414 = ssub.s32 64, 64
          %415 = vsyncadd %s409, %s414
          %s416 = smul.addr %s32, 64
          %s417 = scalar_lea.hbm %s1, %s416
          %s419 = sshll.u32 %s412, 4
          %s420 = int_to_ptr.vmem [resolvable:$true] %s419
          %422 = dma.hbm_to_vmem [thread:$0]  %s417, 64, %s420, %s409
        $region56: #{tpu_custom_call.1} parent=47 // pred_fallthru
          _
      $region48: #{tpu_custom_call.1} parent=5 // pred_fallthru
        _
      %p423 = scmp.le.s32.totalorder 1, %s32
      %p424 = scmp.lt.s32.totalorder %s32, 3
      %p425 = pnand %p423, %p424
      %p426 = pneg %p425
      // Predicated region
      $region57: #{tpu_custom_call.1} parent=5 // pred_check
        _
      $region58: #{tpu_custom_call.1} parent=5 // pred_check_branch
        %428 = sbr.rel (%p425) target = $region60
      $region59: #{tpu_custom_call.1} parent=5 // pred_region
        %s429 = ssub.s32 %s32, 1
        %s430 = sand.u32 %s45, 1
        %s431 = scalar_lea.sflag [#allocation3], %s430
        %s432 = sand.u32 %s45, 1
        %s433 = smul.addr %s432, 4
        %s434 = scalar_lea.vmem [#allocation2], %s433
        // Predicated region
        $region61: #{tpu_custom_call.1} parent=59 // pred_check
          %p435 = pneg %p58
        $region62: #{tpu_custom_call.1} parent=59 // pred_check_branch
          %437 = sbr.rel (%p435) target = $region64
        $region63: #{tpu_custom_call.1} parent=59 // pred_region
          %438 = dma.done %s431, 64
        $region64: #{tpu_custom_call.1} parent=59 // pred_fallthru
          _
        %s439 = sand.u32 %s37, 1
        %s440 = scalar_lea.sflag [#allocation6], %s439
        %s441 = sand.u32 %s71, 1
        %s442 = smul.addr %s441, 4
        %s443 = scalar_lea.vmem [#allocation5], %s442
        // Predicated region
        $region65: #{tpu_custom_call.1} parent=59 // pred_check
          %p444 = pneg %p84
        $region66: #{tpu_custom_call.1} parent=59 // pred_check_branch
          %446 = sbr.rel (%p444) target = $region68
        $region67: #{tpu_custom_call.1} parent=59 // pred_region
          %447 = dma.done %s440, 64
        $region68: #{tpu_custom_call.1} parent=59 // pred_fallthru
          _
        // Predicated region
        $region69: #{tpu_custom_call.1} parent=59 // pred_check
          %p448 = pneg %p105
        $region70: #{tpu_custom_call.1} parent=59 // pred_check_branch
          %450 = sbr.rel (%p448) target = $region72
        $region71: #{tpu_custom_call.1} parent=59 // pred_region
          %451 = dma.done [#allocation6], 1024
        $region72: #{tpu_custom_call.1} parent=59 // pred_fallthru
          _
        // Predicated region
        $region73: #{tpu_custom_call.1} parent=59 // pred_check
          %p452 = pneg %p126
        $region74: #{tpu_custom_call.1} parent=59 // pred_check_branch
          %454 = sbr.rel (%p452) target = $region76
        $region75: #{tpu_custom_call.1} parent=59 // pred_region
          %455 = dma.done [#allocation9], 1024
        $region76: #{tpu_custom_call.1} parent=59 // pred_fallthru
          _
        // Predicated region
        $region77: #{tpu_custom_call.1} parent=59 // pred_check
          %p456 = pneg %p189
        $region78: #{tpu_custom_call.1} parent=59 // pred_check_branch
          %458 = sbr.rel (%p456) target = $region80
        $region79: #{tpu_custom_call.1} parent=59 // pred_region
          %459 = dma.done [#allocation9], 1024
        $region80: #{tpu_custom_call.1} parent=59 // pred_fallthru
          _
        // Predicated region
        $region81: #{tpu_custom_call.1} parent=59 // pred_check
          %p460 = pneg %p210
        $region82: #{tpu_custom_call.1} parent=59 // pred_check_branch
          %462 = sbr.rel (%p460) target = $region84
        $region83: #{tpu_custom_call.1} parent=59 // pred_region
          %463 = dma.done [#allocation12], 1024
        $region84: #{tpu_custom_call.1} parent=59 // pred_fallthru
          _
        %s464 = sand.u32 %s45, 1
        %s465 = scalar_lea.sflag [#allocation3], %s464
        %s466 = sand.u32 %s45, 1
        %s467 = smul.addr %s466, 4
        %s468 = scalar_lea.vmem [#allocation2], %s467
        %p469 = pneg %p58
        %p470 = pneg %p55
        %s471 = sand.u32 %s37, 1
        %s472 = scalar_lea.sflag [#allocation6], %s471
        %s473 = sand.u32 %s71, 1
        %s474 = smul.addr %s473, 4
        %s475 = scalar_lea.vmem [#allocation5], %s474
        %p476 = pneg %p84
        %p477 = pneg %p81
        %p478 = pneg %p105
        %p479 = pneg %p102
        %p480 = pneg %p126
        %p481 = pneg %p123
        %p482 = pneg %p147
        %p483 = pneg %p144
        %p484 = pneg %p168
        %p485 = pneg %p165
        %p486 = pneg %p189
        %p487 = pneg %p186
        %p488 = pneg %p210
        %p489 = pneg %p207
        %p490 = pneg %p231
        %p491 = pneg %p228
        %p492 = pneg %p252
        %p493 = pneg %p249
        %p494 = pneg %p278
        %p495 = pneg %p275
        %s496 = sand.u32 %s265, 1
        %s497 = scalar_lea.sflag [#allocation4], %s496
        %s498 = sand.u32 %s265, 1
        %s499 = smul.addr %s498, 8
        %s500 = scalar_lea.vmem [#allocation13], %s499
        %p501 = pneg %p304
        %p502 = pneg %p301
        %s503 = sand.u32 %s291, 1
        %s504 = scalar_lea.sflag [#allocation15], %s503
        %s505 = sand.u32 %s291, 1
        %s506 = smul.addr %s505, 8
        %s507 = scalar_lea.vmem [#allocation14], %s506
        %v509 = vld [vmem:[%s434] sm:$0xf]
        %v510 = vld [vmem:[%s443] sm:$0xf]
        %v511 = vld [vmem:[#allocation7] sm:$0xf]
        %v512 = vld [vmem:[#allocation7 + $0x4] sm:$0xf]
        %v513 = vld [vmem:[#allocation7 + $0x8] sm:$0xf]
        %v514 = vld [vmem:[#allocation7 + $0xc] sm:$0xf]
        %v515 = vld [vmem:[#allocation7 + $0x10] sm:$0xf]
        %v516 = vld [vmem:[#allocation7 + $0x14] sm:$0xf]
        %v517 = vld [vmem:[#allocation7 + $0x18] sm:$0xf]
        %v518 = vld [vmem:[#allocation7 + $0x1c] sm:$0xf]
        %v519 = vld [vmem:[#allocation7 + $0x20] sm:$0xf]
        %v520 = vld [vmem:[#allocation7 + $0x24] sm:$0xf]
        %v521 = vld [vmem:[#allocation7 + $0x28] sm:$0xf]
        %v522 = vld [vmem:[#allocation7 + $0x2c] sm:$0xf]
        %v523 = vld [vmem:[#allocation7 + $0x30] sm:$0xf]
        %v524 = vld [vmem:[#allocation7 + $0x34] sm:$0xf]
        %v525 = vld [vmem:[#allocation7 + $0x38] sm:$0xf]
        %v526 = vld [vmem:[#allocation7 + $0x3c] sm:$0xf]
        %v527 = vld [vmem:[#allocation8] sm:$0xf]
        %v528 = vld [vmem:[#allocation8 + $0x4] sm:$0xf]
        %v529 = vld [vmem:[#allocation8 + $0x8] sm:$0xf]
        %v530 = vld [vmem:[#allocation8 + $0xc] sm:$0xf]
        %v531 = vld [vmem:[#allocation8 + $0x10] sm:$0xf]
        %v532 = vld [vmem:[#allocation8 + $0x14] sm:$0xf]
        %v533 = vld [vmem:[#allocation8 + $0x18] sm:$0xf]
        %v534 = vld [vmem:[#allocation8 + $0x1c] sm:$0xf]
        %v535 = vld [vmem:[#allocation8 + $0x20] sm:$0xf]
        %v536 = vld [vmem:[#allocation8 + $0x24] sm:$0xf]
        %v537 = vld [vmem:[#allocation8 + $0x28] sm:$0xf]
        %v538 = vld [vmem:[#allocation8 + $0x2c] sm:$0xf]
        %v539 = vld [vmem:[#allocation8 + $0x30] sm:$0xf]
        %v540 = vld [vmem:[#allocation8 + $0x34] sm:$0xf]
        %v541 = vld [vmem:[#allocation8 + $0x38] sm:$0xf]
        %v542 = vld [vmem:[#allocation8 + $0x3c] sm:$0xf]
        %v559 = vunpack.c.l.b16 %v511
        %v560 = vunpack.c.l.b16 %v512
        %v561 = vunpack.c.l.b16 %v513
        %v562 = vunpack.c.l.b16 %v514
        %v563 = vunpack.c.l.b16 %v515
        %v564 = vunpack.c.l.b16 %v516
        %v565 = vunpack.c.l.b16 %v517
        %v566 = vunpack.c.l.b16 %v518
        %v567 = vunpack.c.l.b16 %v519
        %v568 = vunpack.c.l.b16 %v520
        %v569 = vunpack.c.l.b16 %v521
        %v570 = vunpack.c.l.b16 %v522
        %v571 = vunpack.c.l.b16 %v523
        %v572 = vunpack.c.l.b16 %v524
        %v573 = vunpack.c.l.b16 %v525
        %v574 = vunpack.c.l.b16 %v526
        %v575 = vpack.c.b16 %v560, %v559
        %v576 = vpack.c.b16 %v562, %v561
        %v577 = vpack.c.b16 %v564, %v563
        %v578 = vpack.c.b16 %v566, %v565
        %v579 = vpack.c.b16 %v568, %v567
        %v580 = vpack.c.b16 %v570, %v569
        %v581 = vpack.c.b16 %v572, %v571
        %v582 = vpack.c.b16 %v574, %v573
        %591 = vmatprep.subr.bf16.mxu0 0
        %592 = vmatpush1.bf16.msra.mxu0 %v575
        %593 = vmatprep.subr.bf16.mxu0 0
        %594 = vmatpush1.bf16.msra.mxu0 %v576
        %595 = vmatprep.subr.bf16.mxu0 0
        %596 = vmatpush1.bf16.msra.mxu0 %v577
        %597 = vmatprep.subr.bf16.mxu0 0
        %598 = vmatpush1.bf16.msra.mxu0 %v578
        %599 = vmatprep.subr.bf16.mxu0 0
        %600 = vmatpush1.bf16.msra.mxu0 %v579
        %601 = vmatprep.subr.bf16.mxu0 0
        %602 = vmatpush1.bf16.msra.mxu0 %v580
        %603 = vmatprep.subr.bf16.mxu0 0
        %604 = vmatpush1.bf16.msra.mxu0 %v581
        %605 = vmatprep.subr.bf16.mxu0 0
        %606 = vmatpush1.bf16.msra.mxu0 %v582
        %607 = vmatprep.subr.bf16.mxu0 0
        %608 = vmatpush1.bf16.msra.mxu0 0
        %609 = vmatprep.subr.bf16.mxu0 0
        %610 = vmatpush1.bf16.msra.mxu0 0
        %611 = vmatprep.subr.bf16.mxu0 0
        %612 = vmatpush1.bf16.msra.mxu0 0
        %613 = vmatprep.subr.bf16.mxu0 0
        %614 = vmatpush1.bf16.msra.mxu0 0
        %615 = vmatprep.subr.bf16.mxu0 0
        %616 = vmatpush1.bf16.msra.mxu0 0
        %617 = vmatprep.subr.bf16.mxu0 0
        %618 = vmatpush1.bf16.msra.mxu0 0
        %619 = vmatprep.subr.bf16.mxu0 0
        %620 = vmatpush1.bf16.msra.mxu0 0
        %621 = vmatprep.subr.bf16.mxu0 0
        %622 = vmatpush1.bf16.msra.mxu0 0
        %623 = vmatprep.mubr.bf16.mxu0 0
        %624 = vmatmul.mubr.bf16.gmra.mrb[0].mxu0 %v509
        %v625 = vpop.f32.mrb[0].mxu0
        %v626 = vadd.f32 0.0, %v625
        %v627 = vpop.f32.mrb[0].mxu0
        %v628 = vpop.f32.mrb[0].mxu0
        %v629 = vpop.f32.mrb[0].mxu0
        %630 = vdwg.mxu0
        %v647 = vunpack.c.l.b16 %v527
        %v648 = vunpack.c.l.b16 %v528
        %v649 = vunpack.c.l.b16 %v529
        %v650 = vunpack.c.l.b16 %v530
        %v651 = vunpack.c.l.b16 %v531
        %v652 = vunpack.c.l.b16 %v532
        %v653 = vunpack.c.l.b16 %v533
        %v654 = vunpack.c.l.b16 %v534
        %v655 = vunpack.c.l.b16 %v535
        %v656 = vunpack.c.l.b16 %v536
        %v657 = vunpack.c.l.b16 %v537
        %v658 = vunpack.c.l.b16 %v538
        %v659 = vunpack.c.l.b16 %v539
        %v660 = vunpack.c.l.b16 %v540
        %v661 = vunpack.c.l.b16 %v541
        %v662 = vunpack.c.l.b16 %v542
        %v663 = vpack.c.b16 %v648, %v647
        %v664 = vpack.c.b16 %v650, %v649
        %v665 = vpack.c.b16 %v652, %v651
        %v666 = vpack.c.b16 %v654, %v653
        %v667 = vpack.c.b16 %v656, %v655
        %v668 = vpack.c.b16 %v658, %v657
        %v669 = vpack.c.b16 %v660, %v659
        %v670 = vpack.c.b16 %v662, %v661
        %679 = vmatprep.subr.bf16.mxu0 0
        %680 = vmatpush1.bf16.msra.mxu0 %v663
        %681 = vmatprep.subr.bf16.mxu0 0
        %682 = vmatpush1.bf16.msra.mxu0 %v664
        %683 = vmatprep.subr.bf16.mxu0 0
        %684 = vmatpush1.bf16.msra.mxu0 %v665
        %685 = vmatprep.subr.bf16.mxu0 0
        %686 = vmatpush1.bf16.msra.mxu0 %v666
        %687 = vmatprep.subr.bf16.mxu0 0
        %688 = vmatpush1.bf16.msra.mxu0 %v667
        %689 = vmatprep.subr.bf16.mxu0 0
        %690 = vmatpush1.bf16.msra.mxu0 %v668
        %691 = vmatprep.subr.bf16.mxu0 0
        %692 = vmatpush1.bf16.msra.mxu0 %v669
        %693 = vmatprep.subr.bf16.mxu0 0
        %694 = vmatpush1.bf16.msra.mxu0 %v670
        %695 = vmatprep.subr.bf16.mxu0 0
        %696 = vmatpush1.bf16.msra.mxu0 0
        %697 = vmatprep.subr.bf16.mxu0 0
        %698 = vmatpush1.bf16.msra.mxu0 0
        %699 = vmatprep.subr.bf16.mxu0 0
        %700 = vmatpush1.bf16.msra.mxu0 0
        %701 = vmatprep.subr.bf16.mxu0 0
        %702 = vmatpush1.bf16.msra.mxu0 0
        %703 = vmatprep.subr.bf16.mxu0 0
        %704 = vmatpush1.bf16.msra.mxu0 0
        %705 = vmatprep.subr.bf16.mxu0 0
        %706 = vmatpush1.bf16.msra.mxu0 0
        %707 = vmatprep.subr.bf16.mxu0 0
        %708 = vmatpush1.bf16.msra.mxu0 0
        %709 = vmatprep.subr.bf16.mxu0 0
        %710 = vmatpush1.bf16.msra.mxu0 0
        %711 = vmatprep.mubr.bf16.mxu0 0
        %712 = vmatmul.mubr.bf16.gmra.mrb[0].mxu0 %v510
        %v713 = vpop.f32.mrb[0].mxu0
        %v714 = vadd.f32 0.0, %v713
        %v715 = vpop.f32.mrb[0].mxu0
        %v716 = vpop.f32.mrb[0].mxu0
        %v717 = vpop.f32.mrb[0].mxu0
        %718 = vdwg.mxu0
        %v719 = vsub.f32 %v626, %v714
        %v720 = vld [vmem:[%s4] sm:$0x1]
        %v722 = vlaneseq
        %v723 = vshrl.u32 %v722, 7
        %v724 = vsub.s32 0, %v723
        %v725 = vrot.slane %v720, %v724
        %v727 = vadd.f32 %v719, %v725
        %728 = vmatprep.subr.bf16.mxu0 0
        %729 = vmatpush1.bf16.msra.mxu0 %v575
        %730 = vmatprep.subr.bf16.mxu0 0
        %731 = vmatpush1.bf16.msra.mxu0 %v576
        %732 = vmatprep.subr.bf16.mxu0 0
        %733 = vmatpush1.bf16.msra.mxu0 %v577
        %734 = vmatprep.subr.bf16.mxu0 0
        %735 = vmatpush1.bf16.msra.mxu0 %v578
        %736 = vmatprep.subr.bf16.mxu0 0
        %737 = vmatpush1.bf16.msra.mxu0 %v579
        %738 = vmatprep.subr.bf16.mxu0 0
        %739 = vmatpush1.bf16.msra.mxu0 %v580
        %740 = vmatprep.subr.bf16.mxu0 0
        %741 = vmatpush1.bf16.msra.mxu0 %v581
        %742 = vmatprep.subr.bf16.mxu0 0
        %743 = vmatpush1.bf16.msra.mxu0 %v582
        %744 = vmatprep.subr.bf16.mxu0 0
        %745 = vmatpush1.bf16.msra.mxu0 0
        %746 = vmatprep.subr.bf16.mxu0 0
        %747 = vmatpush1.bf16.msra.mxu0 0
        %748 = vmatprep.subr.bf16.mxu0 0
        %749 = vmatpush1.bf16.msra.mxu0 0
        %750 = vmatprep.subr.bf16.mxu0 0
        %751 = vmatpush1.bf16.msra.mxu0 0
        %752 = vmatprep.subr.bf16.mxu0 0
        %753 = vmatpush1.bf16.msra.mxu0 0
        %754 = vmatprep.subr.bf16.mxu0 0
        %755 = vmatpush1.bf16.msra.mxu0 0
        %756 = vmatprep.subr.bf16.mxu0 0
        %757 = vmatpush1.bf16.msra.mxu0 0
        %758 = vmatprep.subr.bf16.mxu0 0
        %759 = vmatpush1.bf16.msra.mxu0 0
        %760 = vmatprep.mubr.bf16.mxu0 0
        %761 = vmatmul.mubr.bf16.gmra.mrb[0].mxu0 %v510
        %v762 = vpop.f32.mrb[0].mxu0
        %v763 = vadd.f32 0.0, %v762
        %v764 = vpop.f32.mrb[0].mxu0
        %v765 = vpop.f32.mrb[0].mxu0
        %v766 = vpop.f32.mrb[0].mxu0
        %767 = vdwg.mxu0
        %768 = vmatprep.subr.bf16.mxu0 0
        %769 = vmatpush1.bf16.msra.mxu0 %v663
        %770 = vmatprep.subr.bf16.mxu0 0
        %771 = vmatpush1.bf16.msra.mxu0 %v664
        %772 = vmatprep.subr.bf16.mxu0 0
        %773 = vmatpush1.bf16.msra.mxu0 %v665
        %774 = vmatprep.subr.bf16.mxu0 0
        %775 = vmatpush1.bf16.msra.mxu0 %v666
        %776 = vmatprep.subr.bf16.mxu0 0
        %777 = vmatpush1.bf16.msra.mxu0 %v667
        %778 = vmatprep.subr.bf16.mxu0 0
        %779 = vmatpush1.bf16.msra.mxu0 %v668
        %780 = vmatprep.subr.bf16.mxu0 0
        %781 = vmatpush1.bf16.msra.mxu0 %v669
        %782 = vmatprep.subr.bf16.mxu0 0
        %783 = vmatpush1.bf16.msra.mxu0 %v670
        %784 = vmatprep.subr.bf16.mxu0 0
        %785 = vmatpush1.bf16.msra.mxu0 0
        %786 = vmatprep.subr.bf16.mxu0 0
        %787 = vmatpush1.bf16.msra.mxu0 0
        %788 = vmatprep.subr.bf16.mxu0 0
        %789 = vmatpush1.bf16.msra.mxu0 0
        %790 = vmatprep.subr.bf16.mxu0 0
        %791 = vmatpush1.bf16.msra.mxu0 0
        %792 = vmatprep.subr.bf16.mxu0 0
        %793 = vmatpush1.bf16.msra.mxu0 0
        %794 = vmatprep.subr.bf16.mxu0 0
        %795 = vmatpush1.bf16.msra.mxu0 0
        %796 = vmatprep.subr.bf16.mxu0 0
        %797 = vmatpush1.bf16.msra.mxu0 0
        %798 = vmatprep.subr.bf16.mxu0 0
        %799 = vmatpush1.bf16.msra.mxu0 0
        %800 = vmatprep.mubr.bf16.mxu0 0
        %801 = vmatmul.mubr.bf16.gmra.mrb[0].mxu0 %v509
        %v802 = vpop.f32.mrb[0].mxu0
        %v803 = vadd.f32 %v763, %v802
        %v804 = vpop.f32.mrb[0].mxu0
        %v805 = vpop.f32.mrb[0].mxu0
        %v806 = vpop.f32.mrb[0].mxu0
        %807 = vdwg.mxu0
        %v808 = vld [vmem:[%s5] sm:$0x1]
        %v810 = vlaneseq
        %v811 = vshrl.u32 %v810, 7
        %v812 = vsub.s32 0, %v811
        %v813 = vrot.slane %v808, %v812
        %v815 = vadd.f32 %v803, %v813
        %v816 = vmax.f32 %v727, 0.0
        %v817 = vpack.c.bf16 %v816, %v816
        %v818 = vmax.f32 %v815, 0.0
        %v819 = vpack.c.bf16 %v818, %v818
        %v820 = vld [vmem:[#allocation10] sm:$0xf]
        %v821 = vld [vmem:[#allocation10 + $0x4] sm:$0xf]
        %v822 = vld [vmem:[#allocation10 + $0x8] sm:$0xf]
        %v823 = vld [vmem:[#allocation10 + $0xc] sm:$0xf]
        %v824 = vld [vmem:[#allocation10 + $0x10] sm:$0xf]
        %v825 = vld [vmem:[#allocation10 + $0x14] sm:$0xf]
        %v826 = vld [vmem:[#allocation10 + $0x18] sm:$0xf]
        %v827 = vld [vmem:[#allocation10 + $0x1c] sm:$0xf]
        %v828 = vld [vmem:[#allocation10 + $0x20] sm:$0xf]
        %v829 = vld [vmem:[#allocation10 + $0x24] sm:$0xf]
        %v830 = vld [vmem:[#allocation10 + $0x28] sm:$0xf]
        %v831 = vld [vmem:[#allocation10 + $0x2c] sm:$0xf]
        %v832 = vld [vmem:[#allocation10 + $0x30] sm:$0xf]
        %v833 = vld [vmem:[#allocation10 + $0x34] sm:$0xf]
        %v834 = vld [vmem:[#allocation10 + $0x38] sm:$0xf]
        %v835 = vld [vmem:[#allocation10 + $0x3c] sm:$0xf]
        %v836 = vld [vmem:[#allocation11] sm:$0xf]
        %v837 = vld [vmem:[#allocation11 + $0x4] sm:$0xf]
        %v838 = vld [vmem:[#allocation11 + $0x8] sm:$0xf]
        %v839 = vld [vmem:[#allocation11 + $0xc] sm:$0xf]
        %v840 = vld [vmem:[#allocation11 + $0x10] sm:$0xf]
        %v841 = vld [vmem:[#allocation11 + $0x14] sm:$0xf]
        %v842 = vld [vmem:[#allocation11 + $0x18] sm:$0xf]
        %v843 = vld [vmem:[#allocation11 + $0x1c] sm:$0xf]
        %v844 = vld [vmem:[#allocation11 + $0x20] sm:$0xf]
        %v845 = vld [vmem:[#allocation11 + $0x24] sm:$0xf]
        %v846 = vld [vmem:[#allocation11 + $0x28] sm:$0xf]
        %v847 = vld [vmem:[#allocation11 + $0x2c] sm:$0xf]
        %v848 = vld [vmem:[#allocation11 + $0x30] sm:$0xf]
        %v849 = vld [vmem:[#allocation11 + $0x34] sm:$0xf]
        %v850 = vld [vmem:[#allocation11 + $0x38] sm:$0xf]
        %v851 = vld [vmem:[#allocation11 + $0x3c] sm:$0xf]
        %v868 = vunpack.c.l.b16 %v820
        %v869 = vunpack.c.l.b16 %v821
        %v870 = vunpack.c.l.b16 %v822
        %v871 = vunpack.c.l.b16 %v823
        %v872 = vunpack.c.l.b16 %v824
        %v873 = vunpack.c.l.b16 %v825
        %v874 = vunpack.c.l.b16 %v826
        %v875 = vunpack.c.l.b16 %v827
        %v876 = vunpack.c.l.b16 %v828
        %v877 = vunpack.c.l.b16 %v829
        %v878 = vunpack.c.l.b16 %v830
        %v879 = vunpack.c.l.b16 %v831
        %v880 = vunpack.c.l.b16 %v832
        %v881 = vunpack.c.l.b16 %v833
        %v882 = vunpack.c.l.b16 %v834
        %v883 = vunpack.c.l.b16 %v835
        %v884 = vpack.c.b16 %v869, %v868
        %v885 = vpack.c.b16 %v871, %v870
        %v886 = vpack.c.b16 %v873, %v872
        %v887 = vpack.c.b16 %v875, %v874
        %v888 = vpack.c.b16 %v877, %v876
        %v889 = vpack.c.b16 %v879, %v878
        %v890 = vpack.c.b16 %v881, %v880
        %v891 = vpack.c.b16 %v883, %v882
        %900 = vmatprep.subr.bf16.mxu0 0
        %901 = vmatpush1.bf16.msra.mxu0 %v884
        %902 = vmatprep.subr.bf16.mxu0 0
        %903 = vmatpush1.bf16.msra.mxu0 %v885
        %904 = vmatprep.subr.bf16.mxu0 0
        %905 = vmatpush1.bf16.msra.mxu0 %v886
        %906 = vmatprep.subr.bf16.mxu0 0
        %907 = vmatpush1.bf16.msra.mxu0 %v887
        %908 = vmatprep.subr.bf16.mxu0 0
        %909 = vmatpush1.bf16.msra.mxu0 %v888
        %910 = vmatprep.subr.bf16.mxu0 0
        %911 = vmatpush1.bf16.msra.mxu0 %v889
        %912 = vmatprep.subr.bf16.mxu0 0
        %913 = vmatpush1.bf16.msra.mxu0 %v890
        %914 = vmatprep.subr.bf16.mxu0 0
        %915 = vmatpush1.bf16.msra.mxu0 %v891
        %916 = vmatprep.subr.bf16.mxu0 0
        %917 = vmatpush1.bf16.msra.mxu0 0
        %918 = vmatprep.subr.bf16.mxu0 0
        %919 = vmatpush1.bf16.msra.mxu0 0
        %920 = vmatprep.subr.bf16.mxu0 0
        %921 = vmatpush1.bf16.msra.mxu0 0
        %922 = vmatprep.subr.bf16.mxu0 0
        %923 = vmatpush1.bf16.msra.mxu0 0
        %924 = vmatprep.subr.bf16.mxu0 0
        %925 = vmatpush1.bf16.msra.mxu0 0
        %926 = vmatprep.subr.bf16.mxu0 0
        %927 = vmatpush1.bf16.msra.mxu0 0
        %928 = vmatprep.subr.bf16.mxu0 0
        %929 = vmatpush1.bf16.msra.mxu0 0
        %930 = vmatprep.subr.bf16.mxu0 0
        %931 = vmatpush1.bf16.msra.mxu0 0
        %932 = vmatprep.mubr.bf16.mxu0 0
        %933 = vmatmul.mubr.bf16.gmra.mrb[0].mxu0 %v817
        %v934 = vpop.f32.mrb[0].mxu0
        %v935 = vadd.f32 0.0, %v934
        %v936 = vpop.f32.mrb[0].mxu0
        %v937 = vpop.f32.mrb[0].mxu0
        %v938 = vpop.f32.mrb[0].mxu0
        %939 = vdwg.mxu0
        %v956 = vunpack.c.l.b16 %v836
        %v957 = vunpack.c.l.b16 %v837
        %v958 = vunpack.c.l.b16 %v838
        %v959 = vunpack.c.l.b16 %v839
        %v960 = vunpack.c.l.b16 %v840
        %v961 = vunpack.c.l.b16 %v841
        %v962 = vunpack.c.l.b16 %v842
        %v963 = vunpack.c.l.b16 %v843
        %v964 = vunpack.c.l.b16 %v844
        %v965 = vunpack.c.l.b16 %v845
        %v966 = vunpack.c.l.b16 %v846
        %v967 = vunpack.c.l.b16 %v847
        %v968 = vunpack.c.l.b16 %v848
        %v969 = vunpack.c.l.b16 %v849
        %v970 = vunpack.c.l.b16 %v850
        %v971 = vunpack.c.l.b16 %v851
        %v972 = vpack.c.b16 %v957, %v956
        %v973 = vpack.c.b16 %v959, %v958
        %v974 = vpack.c.b16 %v961, %v960
        %v975 = vpack.c.b16 %v963, %v962
        %v976 = vpack.c.b16 %v965, %v964
        %v977 = vpack.c.b16 %v967, %v966
        %v978 = vpack.c.b16 %v969, %v968
        %v979 = vpack.c.b16 %v971, %v970
        %988 = vmatprep.subr.bf16.mxu0 0
        %989 = vmatpush1.bf16.msra.mxu0 %v972
        %990 = vmatprep.subr.bf16.mxu0 0
        %991 = vmatpush1.bf16.msra.mxu0 %v973
        %992 = vmatprep.subr.bf16.mxu0 0
        %993 = vmatpush1.bf16.msra.mxu0 %v974
        %994 = vmatprep.subr.bf16.mxu0 0
        %995 = vmatpush1.bf16.msra.mxu0 %v975
        %996 = vmatprep.subr.bf16.mxu0 0
        %997 = vmatpush1.bf16.msra.mxu0 %v976
        %998 = vmatprep.subr.bf16.mxu0 0
        %999 = vmatpush1.bf16.msra.mxu0 %v977
        %1000 = vmatprep.subr.bf16.mxu0 0
        %1001 = vmatpush1.bf16.msra.mxu0 %v978
        %1002 = vmatprep.subr.bf16.mxu0 0
        %1003 = vmatpush1.bf16.msra.mxu0 %v979
        %1004 = vmatprep.subr.bf16.mxu0 0
        %1005 = vmatpush1.bf16.msra.mxu0 0
        %1006 = vmatprep.subr.bf16.mxu0 0
        %1007 = vmatpush1.bf16.msra.mxu0 0
        %1008 = vmatprep.subr.bf16.mxu0 0
        %1009 = vmatpush1.bf16.msra.mxu0 0
        %1010 = vmatprep.subr.bf16.mxu0 0
        %1011 = vmatpush1.bf16.msra.mxu0 0
        %1012 = vmatprep.subr.bf16.mxu0 0
        %1013 = vmatpush1.bf16.msra.mxu0 0
        %1014 = vmatprep.subr.bf16.mxu0 0
        %1015 = vmatpush1.bf16.msra.mxu0 0
        %1016 = vmatprep.subr.bf16.mxu0 0
        %1017 = vmatpush1.bf16.msra.mxu0 0
        %1018 = vmatprep.subr.bf16.mxu0 0
        %1019 = vmatpush1.bf16.msra.mxu0 0
        %1020 = vmatprep.mubr.bf16.mxu0 0
        %1021 = vmatmul.mubr.bf16.gmra.mrb[0].mxu0 %v819
        %v1022 = vpop.f32.mrb[0].mxu0
        %v1023 = vadd.f32 0.0, %v1022
        %v1024 = vpop.f32.mrb[0].mxu0
        %v1025 = vpop.f32.mrb[0].mxu0
        %v1026 = vpop.f32.mrb[0].mxu0
        %1027 = vdwg.mxu0
        %v1028 = vsub.f32 %v935, %v1023
        %v1029 = vld [vmem:[%s8] sm:$0x1]
        %v1031 = vlaneseq
        %v1032 = vshrl.u32 %v1031, 7
        %v1033 = vsub.s32 0, %v1032
        %v1034 = vrot.slane %v1029, %v1033
        %v1036 = vadd.f32 %v1028, %v1034
        %1037 = vmatprep.subr.bf16.mxu0 0
        %1038 = vmatpush1.bf16.msra.mxu0 %v884
        %1039 = vmatprep.subr.bf16.mxu0 0
        %1040 = vmatpush1.bf16.msra.mxu0 %v885
        %1041 = vmatprep.subr.bf16.mxu0 0
        %1042 = vmatpush1.bf16.msra.mxu0 %v886
        %1043 = vmatprep.subr.bf16.mxu0 0
        %1044 = vmatpush1.bf16.msra.mxu0 %v887
        %1045 = vmatprep.subr.bf16.mxu0 0
        %1046 = vmatpush1.bf16.msra.mxu0 %v888
        %1047 = vmatprep.subr.bf16.mxu0 0
        %1048 = vmatpush1.bf16.msra.mxu0 %v889
        %1049 = vmatprep.subr.bf16.mxu0 0
        %1050 = vmatpush1.bf16.msra.mxu0 %v890
        %1051 = vmatprep.subr.bf16.mxu0 0
        %1052 = vmatpush1.bf16.msra.mxu0 %v891
        %1053 = vmatprep.subr.bf16.mxu0 0
        %1054 = vmatpush1.bf16.msra.mxu0 0
        %1055 = vmatprep.subr.bf16.mxu0 0
        %1056 = vmatpush1.bf16.msra.mxu0 0
        %1057 = vmatprep.subr.bf16.mxu0 0
        %1058 = vmatpush1.bf16.msra.mxu0 0
        %1059 = vmatprep.subr.bf16.mxu0 0
        %1060 = vmatpush1.bf16.msra.mxu0 0
        %1061 = vmatprep.subr.bf16.mxu0 0
        %1062 = vmatpush1.bf16.msra.mxu0 0
        %1063 = vmatprep.subr.bf16.mxu0 0
        %1064 = vmatpush1.bf16.msra.mxu0 0
        %1065 = vmatprep.subr.bf16.mxu0 0
        %1066 = vmatpush1.bf16.msra.mxu0 0
        %1067 = vmatprep.subr.bf16.mxu0 0
        %1068 = vmatpush1.bf16.msra.mxu0 0
        %1069 = vmatprep.mubr.bf16.mxu0 0
        %1070 = vmatmul.mubr.bf16.gmra.mrb[0].mxu0 %v819
        %v1071 = vpop.f32.mrb[0].mxu0
        %v1072 = vadd.f32 0.0, %v1071
        %v1073 = vpop.f32.mrb[0].mxu0
        %v1074 = vpop.f32.mrb[0].mxu0
        %v1075 = vpop.f32.mrb[0].mxu0
        %1076 = vdwg.mxu0
        %1077 = vmatprep.subr.bf16.mxu0 0
        %1078 = vmatpush1.bf16.msra.mxu0 %v972
        %1079 = vmatprep.subr.bf16.mxu0 0
        %1080 = vmatpush1.bf16.msra.mxu0 %v973
        %1081 = vmatprep.subr.bf16.mxu0 0
        %1082 = vmatpush1.bf16.msra.mxu0 %v974
        %1083 = vmatprep.subr.bf16.mxu0 0
        %1084 = vmatpush1.bf16.msra.mxu0 %v975
        %1085 = vmatprep.subr.bf16.mxu0 0
        %1086 = vmatpush1.bf16.msra.mxu0 %v976
        %1087 = vmatprep.subr.bf16.mxu0 0
        %1088 = vmatpush1.bf16.msra.mxu0 %v977
        %1089 = vmatprep.subr.bf16.mxu0 0
        %1090 = vmatpush1.bf16.msra.mxu0 %v978
        %1091 = vmatprep.subr.bf16.mxu0 0
        %1092 = vmatpush1.bf16.msra.mxu0 %v979
        %1093 = vmatprep.subr.bf16.mxu0 0
        %1094 = vmatpush1.bf16.msra.mxu0 0
        %1095 = vmatprep.subr.bf16.mxu0 0
        %1096 = vmatpush1.bf16.msra.mxu0 0
        %1097 = vmatprep.subr.bf16.mxu0 0
        %1098 = vmatpush1.bf16.msra.mxu0 0
        %1099 = vmatprep.subr.bf16.mxu0 0
        %1100 = vmatpush1.bf16.msra.mxu0 0
        %1101 = vmatprep.subr.bf16.mxu0 0
        %1102 = vmatpush1.bf16.msra.mxu0 0
        %1103 = vmatprep.subr.bf16.mxu0 0
        %1104 = vmatpush1.bf16.msra.mxu0 0
        %1105 = vmatprep.subr.bf16.mxu0 0
        %1106 = vmatpush1.bf16.msra.mxu0 0
        %1107 = vmatprep.subr.bf16.mxu0 0
        %1108 = vmatpush1.bf16.msra.mxu0 0
        %1109 = vmatprep.mubr.bf16.mxu0 0
        %1110 = vmatmul.mubr.bf16.gmra.mrb[0].mxu0 %v817
        %v1111 = vpop.f32.mrb[0].mxu0
        %v1112 = vadd.f32 %v1072, %v1111
        %v1113 = vpop.f32.mrb[0].mxu0
        %v1114 = vpop.f32.mrb[0].mxu0
        %v1115 = vpop.f32.mrb[0].mxu0
        %1116 = vdwg.mxu0
        %v1117 = vld [vmem:[%s9] sm:$0x1]
        %v1119 = vlaneseq
        %v1120 = vshrl.u32 %v1119, 7
        %v1121 = vsub.s32 0, %v1120
        %v1122 = vrot.slane %v1117, %v1121
        %v1124 = vadd.f32 %v1112, %v1122
        %1125 = vst [vmem:[%s500] sm:$0xff] %v1036
        %1126 = vst [vmem:[%s507] sm:$0xff] %v1124
        %s1127 = sand.u32 %s265, 1
        %s1128 = scalar_lea.sflag [#allocation4], %s1127
        %s1129 = sand.u32 %s265, 1
        %s1130 = smul.addr %s1129, 8
        %s1131 = scalar_lea.vmem [#allocation13], %s1130
        %s1132 = sand.u32 %s291, 1
        %s1133 = scalar_lea.sflag [#allocation15], %s1132
        %s1134 = sand.u32 %s291, 1
        %s1135 = smul.addr %s1134, 8
        %s1136 = scalar_lea.vmem [#allocation14], %s1135
        // Predicated region
        $region85: #{tpu_custom_call.1} parent=59 // pred_check
          %p1137 = pneg %p275
        $region86: #{tpu_custom_call.1} parent=59 // pred_check_branch
          %1139 = sbr.rel (%p1137) target = $region88
        $region87: #{tpu_custom_call.1} parent=59 // pred_region
          %s1141 = ssub.s32 128, 128
          %1142 = vsyncadd %s1128, %s1141
          %s1143 = smul.addr %s37, 128
          %s1144 = scalar_lea.hbm %s10, %s1143
          %s1146 = sshll.u32 %s1131, 4
          %s1147 = int_to_ptr.vmem [resolvable:$true] %s1146
          %1149 = dma.vmem_to_hbm [thread:$0]  %s1147, 128, %s1144, %s1128
        $region88: #{tpu_custom_call.1} parent=59 // pred_fallthru
          _
        // Predicated region
        $region89: #{tpu_custom_call.1} parent=59 // pred_check
          %p1150 = pneg %p301
        $region90: #{tpu_custom_call.1} parent=59 // pred_check_branch
          %1152 = sbr.rel (%p1150) target = $region92
        $region91: #{tpu_custom_call.1} parent=59 // pred_region
          %s1154 = ssub.s32 128, 128
          %1155 = vsyncadd %s1133, %s1154
          %s1156 = smul.addr %s37, 128
          %s1157 = scalar_lea.hbm %s11, %s1156
          %s1159 = sshll.u32 %s1136, 4
          %s1160 = int_to_ptr.vmem [resolvable:$true] %s1159
          %1162 = dma.vmem_to_hbm [thread:$0]  %s1160, 128, %s1157, %s1133
        $region92: #{tpu_custom_call.1} parent=59 // pred_fallthru
          _
      $region60: #{tpu_custom_call.1} parent=5 // pred_fallthru
        _
      %p1163 = scmp.le.s32.totalorder 2, %s32
      // Predicated region
      $region93: #{tpu_custom_call.1} parent=5 // pred_check
        %p1164 = pneg %p1163
      $region94: #{tpu_custom_call.1} parent=5 // pred_check_branch
        %1166 = sbr.rel (%p1164) target = $region96
      $region95: #{tpu_custom_call.1} parent=5 // pred_region
        %s1167 = ssub.s32 %s32, 2
        // Predicated region
        $region97: #{tpu_custom_call.1} parent=95 // pred_check
          %p1168 = pneg %p281
        $region98: #{tpu_custom_call.1} parent=95 // pred_check_branch
          %1170 = sbr.rel (%p1168) target = $region100
        $region99: #{tpu_custom_call.1} parent=95 // pred_region
          %s1171 = sand.u32 %s266, 1
          %s1172 = scalar_lea.sflag [#allocation4], %s1171
          %s1173 = sand.u32 %s266, 1
          %s1174 = smul.addr %s1173, 8
          %s1175 = scalar_lea.vmem [#allocation13], %s1174
          %1176 = dma.done %s1172, 128
        $region100: #{tpu_custom_call.1} parent=95 // pred_fallthru
          _
        // Predicated region
        $region101: #{tpu_custom_call.1} parent=95 // pred_check
          %p1177 = pneg %p307
        $region102: #{tpu_custom_call.1} parent=95 // pred_check_branch
          %1179 = sbr.rel (%p1177) target = $region104
        $region103: #{tpu_custom_call.1} parent=95 // pred_region
          %s1180 = sand.u32 %s292, 1
          %s1181 = scalar_lea.sflag [#allocation15], %s1180
          %s1182 = sand.u32 %s292, 1
          %s1183 = smul.addr %s1182, 8
          %s1184 = scalar_lea.vmem [#allocation14], %s1183
          %1185 = dma.done %s1181, 128
        $region104: #{tpu_custom_call.1} parent=95 // pred_fallthru
          _
      $region96: #{tpu_custom_call.1} parent=5 // pred_fallthru
        _
    $region6: #{tpu_custom_call.1} parent=1 // loop_footer
      %s36 = sadd.s32 1, %s32
    $region7: #{tpu_custom_call.1} parent=1 // loop_footer_branch
      %31 = sbr.rel target = $region3
    $region8: #{tpu_custom_call.1} parent=1 // loop_exit
      _
    %1186 = vsyncpa [#allocation3], 1
    %s1187 = scalar_lea.sflag [#allocation3], 1
    %1188 = vsyncpa %s1187, 1
    %1189 = vsyncpa [#allocation6], 1
    %s1190 = scalar_lea.sflag [#allocation6], 1
    %1191 = vsyncpa %s1190, 1
    %1192 = vsyncpa [#allocation9], 1
    %1193 = vsyncpa [#allocation12], 1
    %1194 = vsyncpa [#allocation4], 1
    %s1195 = scalar_lea.sflag [#allocation4], 1
    %1196 = vsyncpa %s1195, 1
    %1197 = vsyncpa [#allocation15], 1
    %s1198 = scalar_lea.sflag [#allocation15], 1
    %1199 = vsyncpa %s1198, 1

</llo_original>
